<compile_context>
chip_gen: v5e
topology: v5e:2x2
jax: 0.10.0
libtpu: 0.0.40
codegen_flags: <defaults>
</compile_context>

<pallas_src>
import functools

import jax
import jax.numpy as jnp
from jax import lax
from jax.experimental import pallas as pl
from jax.experimental.pallas import tpu as pltpu


def _approx_reciprocal(x):
    """EUP approximate reciprocal when available; fallback to a VPU divide."""
    if hasattr(pl, "reciprocal"):
        return pl.reciprocal(x, approx=True)
    return 1.0 / x


def _make_attention_kernel(s_valid, ew_dtype):
    """Build the kernel with static config (valid seq len, elementwise dtype)."""

    def attention_kernel(enc_ref, hproj_ref, w1e_ref, w2_ref, out_ref):
        # enc_ref  : (TILE_B, S_pad, D) encoder outputs (stream dtype)
        # hproj_ref: (TILE_B, 1, D)     hidden_state @ W1h^T + b1 (f32)
        # w1e_ref  : (D, D)             encoder half of linear1 weight (transposed)
        # w2_ref   : (1, D)             linear2 weight row (f32)
        # out_ref  : (TILE_B, 1, D)     context vectors
        tb, s, d = enc_ref.shape
        enc = enc_ref[...]                                        # (TB, S, D)

        # linear1 over the whole tile as ONE (TB*S, D) @ (D, D) MXU matmul,
        # f32 accumulation.  S is padded to a sublane multiple outside the
        # kernel, so this reshape is layout-free.
        pre = jnp.dot(enc.reshape(tb * s, d), w1e_ref[...],
                      preferred_element_type=jnp.float32)          # (TB*S, D)
        pre = pre.reshape(tb, s, d) + hproj_ref[...].astype(jnp.float32)

        # tanh saturates the single EUP slot first; bf16 on v6e/v7x (~2x EUP
        # throughput) also halves the (TB,S,D) intermediate.
        h = jnp.tanh(pre.astype(ew_dtype))                         # (TB, S, D)

        # linear2 (no bias): lane-wise multiply, reduce in f32 -> (TB, S).
        e = jnp.sum((h * w2_ref[...].astype(ew_dtype)).astype(jnp.float32),
                    axis=-1)

        # Mask sequence padding (static condition; no-op when S % 8 == 0).
        if s_valid < s:
            col = lax.broadcasted_iota(jnp.int32, (tb, s), 1)
            e = jnp.where(col < s_valid, e, -jnp.inf)

        # Softmax over the sequence axis: pure lane reductions in f32, with
        # the normalization divide moved onto the otherwise-idle EUP slot.
        e = e - jnp.max(e, axis=-1, keepdims=True)
        p = jnp.exp(e)
        alpha = p * _approx_reciprocal(jnp.sum(p, axis=-1, keepdims=True))

        # context[b] = sum_s alpha[b,s] * enc[b,s,:] — VPU multiply + sublane
        # reduce (different VLIW slots than MXU/EUP), alpha kept in f32.
        ctx = jnp.sum(alpha[:, :, None] * enc.astype(jnp.float32),
                      axis=1, keepdims=True)                       # (TB, 1, D)
        out_ref[...] = ctx.astype(out_ref.dtype)

    return attention_kernel


def _vmem_limit_bytes():
    """Generation-aware scoped-VMEM limit (leave headroom under physical)."""
    cap = None
    try:
        cap = getattr(pltpu.get_tpu_info(), "vmem_capacity_bytes", None)
    except Exception:
        cap = None
    if not cap:
        kind = jax.devices()[0].device_kind.lower()
        cap = (64 << 20) if "v7" in kind else (128 << 20)
    # ~48 MiB on 64 MiB chips (v7x-class), ~90 MiB on 128 MiB chips.
    return min(int(cap * 0.7), 96 << 20)


def _pick_tile_b(B, S_pad, D, stream_itemsize, vmem_budget, min_steps):
    """Batch-tile size: largest divisor of B whose full VMEM footprint fits
    the budget, preferring >= min_steps grid steps (megacore on v7x)."""

    def footprint(t):
        blk = t * S_pad * D
        return (2 * blk * stream_itemsize       # encoder block, double-buffered
                + 3 * blk * 4                   # f32 pre / h / ctx intermediates
                + D * D * stream_itemsize       # W1e (single-buffered)
                + 4 * t * D * 4)                # hproj / out double buffers

    divisors = [t for t in range(1, B + 1) if B % t == 0]
    fits = [t for t in divisors if footprint(t) <= vmem_budget]
    if not fits:
        # TODO(synk): split the sequence axis with an online-softmax
        # accumulator when even a single batch row exceeds the VMEM budget.
        return 1
    min_steps = min(min_steps, B)
    multi = [t for t in fits if B // t >= min_steps]
    return max(multi) if multi else max(fits)


@functools.partial(jax.jit, static_argnames=("stream_dtype", "min_steps"))
def attention_forward(hidden_state, encoder_outputs, w1, b1, w2, *,
                      stream_dtype=None, min_steps=None):
    """hidden_state: (B, D); encoder_outputs: (B, S, D);
       w1: (D, 2D) [nn.Linear weight], b1: (D,), w2: (1, D).
       stream_dtype: dtype used to stream the encoder / feed the MXU
       (e.g. jnp.bfloat16); softmax/accumulation stay f32.
       Returns (B, D) context vectors matching the PyTorch forward."""
    B, S, D = encoder_outputs.shape
    out_dtype = encoder_outputs.dtype
    stream_dtype = jnp.dtype(stream_dtype or out_dtype)
    stream_isz = stream_dtype.itemsize

    kind = jax.devices()[0].device_kind.lower()
    # bf16 elementwise/tanh only where the VPU/EUP support it (v6e/v7x).
    ew_dtype = (jnp.bfloat16
                if stream_dtype == jnp.bfloat16 and ("v6" in kind or "v7" in kind)
                else jnp.float32)
    if min_steps is None:
        min_steps = 2 if "v7" in kind else 1   # v7x: 2 TensorCores per chip.

    # Split the concat(enc, hid) matmul algebraically:
    #   tanh([enc, hid] @ W1^T + b1) = tanh(enc @ W1e + (hid @ W1h^T + b1)).
    # The hidden half is one small batched matmul done outside the kernel.
    w1e = jnp.transpose(w1[:, :D]).astype(stream_dtype)              # (D, D)
    hid_proj = (hidden_state @ jnp.transpose(w1[:, D:]) + b1)        # (B, D)
    hid_proj = hid_proj.reshape(B, 1, D).astype(jnp.float32)
    w2r = w2.reshape(1, D).astype(jnp.float32)

    # Pad the sequence to a sublane multiple so the in-kernel
    # (TB,S,D)->(TB*S,D) reshape is layout-free; padded rows are masked out of
    # the softmax inside the kernel.  (Production callers should pass bf16 /
    # pre-padded encoders so these casts/pads fuse upstream.)
    S_pad = -(-S // 8) * 8
    enc = encoder_outputs.astype(stream_dtype)
    if S_pad != S:
        enc = jnp.pad(enc, ((0, 0), (0, S_pad - S), (0, 0)))

    vmem_limit = _vmem_limit_bytes()
    tile_b = _pick_tile_b(B, S_pad, D, stream_isz,
                          int(vmem_limit * 0.85), min_steps)
    grid = (B // tile_b,)

    # Constant-index weight blocks: single-buffered (saves VMEM, esp. on v7x).
    const_kw = dict(pipeline_mode=pl.Buffered(buffer_count=1))

    try:
        cost = pl.CostEstimate(
            flops=int(2 * B * S_pad * D * (D + 2)),
            transcendentals=int(B * S_pad * (D + 1)),
            bytes_accessed=int(B * S_pad * D * stream_isz
                               + D * D * stream_isz
                               + 2 * B * D * 4 + D * 4))
    except Exception:
        cost = None

    out = pl.pallas_call(
        _make_attention_kernel(S, ew_dtype),
        out_shape=jax.ShapeDtypeStruct((B, 1, D), out_dtype),
        grid_spec=pltpu.PrefetchScalarGridSpec(
            num_scalar_prefetch=0,
            grid=grid,
            in_specs=[
                pl.BlockSpec((tile_b, S_pad, D), lambda i: (i, 0, 0)),  # encoder
                pl.BlockSpec((tile_b, 1, D), lambda i: (i, 0, 0)),      # hid proj
                pl.BlockSpec((D, D), lambda i: (0, 0), **const_kw),     # W1e
                pl.BlockSpec((1, D), lambda i: (0, 0), **const_kw),     # w2
            ],
            out_specs=pl.BlockSpec((tile_b, 1, D), lambda i: (i, 0, 0)),
        ),
        compiler_params=pltpu.CompilerParams(
            dimension_semantics=("parallel",),
            vmem_limit_bytes=vmem_limit),
        cost_estimate=cost,
    )(enc, hid_proj, w1e, w2r)
    return out.reshape(B, D)


def attention_reference(hidden_state, encoder_outputs, w1, b1, w2):
    """Plain-JAX replica of the PyTorch forward, for validation."""
    B, S, D = encoder_outputs.shape
    h = jnp.repeat(hidden_state[:, None, :], S, axis=1)
    inputs = jnp.concatenate([encoder_outputs, h], axis=2).reshape(-1, 2 * D)
    o = jnp.tanh(inputs @ w1.T + b1) @ w2.T                      # (B*S, 1)
    e = o.reshape(B, S)
    alpha = jax.nn.softmax(e, axis=1)
    return jnp.einsum("bs,bsd->bd", alpha, encoder_outputs)


if __name__ == "__main__":
    def make_inputs(key, B, S, D):
        k_hid, k_enc, k_w1, k_b1, k_w2 = jax.random.split(key, 5)
        hidden_state = jax.random.normal(k_hid, (B, D), dtype=jnp.float32)
        encoder_outputs = jax.random.normal(k_enc, (B, S, D), dtype=jnp.float32)
        std1 = (2.0 / (2 * D + D)) ** 0.5
        std2 = (2.0 / (D + 1)) ** 0.5
        w1 = std1 * jax.random.normal(k_w1, (D, 2 * D), dtype=jnp.float32)
        b1 = 0.01 * jax.random.normal(k_b1, (D,), dtype=jnp.float32)
        w2 = std2 * jax.random.normal(k_w2, (1, D), dtype=jnp.float32)
        return hidden_state, encoder_outputs, w1, b1, w2

    # 1) f32 path at the module's nominal small shapes.
    B, S, D = 2, 8, 32
    args = make_inputs(jax.random.PRNGKey(0), B, S, D)
    ctx = attention_forward(*args)
    jax.block_until_ready(ctx)
    ref = attention_reference(*args)
    assert ctx.shape == (B, D)
    assert jnp.allclose(ctx, ref, atol=5e-3, rtol=5e-3), (
        f"f32 max abs diff = {jnp.max(jnp.abs(ctx - ref))}")

    # 2) bf16-streamed path with a non-sublane-aligned sequence (exercises the
    #    S padding + in-kernel mask) and a multi-step parallel grid.
    B2, S2, D2 = 4, 11, 128
    args2 = make_inputs(jax.random.PRNGKey(1), B2, S2, D2)
    ctx2 = attention_forward(*args2, stream_dtype=jnp.bfloat16, min_steps=2)
    jax.block_until_ready(ctx2)
    ref2 = attention_reference(*args2)
    assert ctx2.shape == (B2, D2)
    assert jnp.allclose(ctx2, ref2, atol=6e-2, rtol=6e-2), (
        f"bf16 max abs diff = {jnp.max(jnp.abs(ctx2 - ref2))}")

    print("KERNEL_OK")
</pallas_src>

<mosaic_0001>
module attributes {stable_mosaic.version = 11 : i64} {
  func.func @attention_kernel(%arg0: i32, %arg1: memref<2x8x32xf32, #tpu.memory_space<vmem>>, %arg2: memref<2x1x32xf32, #tpu.memory_space<vmem>>, %arg3: memref<32x32xf32, #tpu.memory_space<vmem>>, %arg4: memref<1x32xf32, #tpu.memory_space<vmem>>, %arg5: memref<2x1x32xf32, #tpu.memory_space<vmem>>) attributes {dimension_semantics = [#tpu.dimension_semantics<parallel>], iteration_bounds = array<i64: 1>, scalar_prefetch = 0 : i64, scratch_operands = 0 : i64, tpu.core_type = #tpu.core_type<tc>, window_params = [{transform_indices = @transform_0, window_bounds = array<i64: 2, 8, 32>}, {transform_indices = @transform_1, window_bounds = array<i64: 2, 1, 32>}, {pipeline_mode = #tpu.pipeline_mode<synchronous>, transform_indices = @transform_2, window_bounds = array<i64: 32, 32>}, {pipeline_mode = #tpu.pipeline_mode<synchronous>, transform_indices = @transform_3, window_bounds = array<i64: 1, 32>}, {transform_indices = @transform_4, window_bounds = array<i64: 2, 1, 32>}]} {
    %c0 = arith.constant 0 : index
    %c0_0 = arith.constant 0 : index
    %c0_1 = arith.constant 0 : index
    %0 = vector.load %arg1[%c0, %c0_0, %c0_1] : memref<2x8x32xf32, #tpu.memory_space<vmem>>, vector<2x8x32xf32>
    %1 = vector.shape_cast %0 : vector<2x8x32xf32> to vector<16x32xf32>
    %c0_2 = arith.constant 0 : index
    %c0_3 = arith.constant 0 : index
    %2 = vector.load %arg3[%c0_2, %c0_3] : memref<32x32xf32, #tpu.memory_space<vmem>>, vector<32x32xf32>
    %cst = arith.constant dense<0.000000e+00> : vector<16x32xf32>
    %3 = tpu.matmul %1, %2, %cst {dimension_numbers = #tpu.dot_dimension_numbers<[1], [0], [0], [1], [0, 0, 1, 1], [], []>} : vector<16x32xf32>, vector<32x32xf32>, vector<16x32xf32> -> vector<16x32xf32>
    %4 = vector.shape_cast %3 : vector<16x32xf32> to vector<2x8x32xf32>
    %c0_4 = arith.constant 0 : index
    %c0_5 = arith.constant 0 : index
    %c0_6 = arith.constant 0 : index
    %5 = vector.load %arg2[%c0_4, %c0_5, %c0_6] : memref<2x1x32xf32, #tpu.memory_space<vmem>>, vector<2x1x32xf32>
    %6 = vector.broadcast %5 : vector<2x1x32xf32> to vector<2x8x32xf32>
    %7 = arith.addf %4, %6 : vector<2x8x32xf32>
    %8 = math.tanh %7 : vector<2x8x32xf32>
    %c0_7 = arith.constant 0 : index
    %c0_8 = arith.constant 0 : index
    %9 = vector.load %arg4[%c0_7, %c0_8] : memref<1x32xf32, #tpu.memory_space<vmem>>, vector<1x32xf32>
    %10 = vector.shape_cast %9 : vector<1x32xf32> to vector<1x1x32xf32>
    %11 = vector.broadcast %10 : vector<1x1x32xf32> to vector<2x8x32xf32>
    %12 = arith.mulf %8, %11 : vector<2x8x32xf32>
    %cst_9 = arith.constant dense<0.000000e+00> : vector<2x8xf32>
    %13 = vector.multi_reduction <add>, %12, %cst_9 [2] : vector<2x8x32xf32> to vector<2x8xf32>
    %cst_10 = arith.constant dense<0xFF800000> : vector<2xf32>
    %14 = vector.multi_reduction <maximumf>, %13, %cst_10 [1] : vector<2x8xf32> to vector<2xf32>
    %15 = vector.shape_cast %14 : vector<2xf32> to vector<2x1xf32>
    %16 = vector.broadcast %15 : vector<2x1xf32> to vector<2x8xf32>
    %17 = arith.subf %13, %16 : vector<2x8xf32>
    %18 = math.exp %17 : vector<2x8xf32>
    %cst_11 = arith.constant dense<0.000000e+00> : vector<2xf32>
    %19 = vector.multi_reduction <add>, %18, %cst_11 [1] : vector<2x8xf32> to vector<2xf32>
    %20 = vector.shape_cast %19 : vector<2xf32> to vector<2x1xf32>
    %21 = tpu.reciprocal %20 {approx = true} : vector<2x1xf32> -> vector<2x1xf32>
    %22 = vector.broadcast %21 : vector<2x1xf32> to vector<2x8xf32>
    %23 = arith.mulf %18, %22 : vector<2x8xf32>
    %24 = vector.shape_cast %23 : vector<2x8xf32> to vector<2x8x1xf32>
    %25 = vector.broadcast %24 : vector<2x8x1xf32> to vector<2x8x32xf32>
    %26 = arith.mulf %25, %0 : vector<2x8x32xf32>
    %cst_12 = arith.constant dense<0.000000e+00> : vector<2x32xf32>
    %27 = vector.multi_reduction <add>, %26, %cst_12 [1] : vector<2x8x32xf32> to vector<2x32xf32>
    %28 = vector.shape_cast %27 : vector<2x32xf32> to vector<2x1x32xf32>
    %c0_13 = arith.constant 0 : index
    %c0_14 = arith.constant 0 : index
    %c0_15 = arith.constant 0 : index
    %29 = vector.load %arg5[%c0_13, %c0_14, %c0_15] : memref<2x1x32xf32, #tpu.memory_space<vmem>>, vector<2x1x32xf32>
    tpu.vector_store %arg5[%c0_13, %c0_14, %c0_15], %28 {strides = array<i32>} : memref<2x1x32xf32, #tpu.memory_space<vmem>>, vector<2x1x32xf32>,
    return
  }
  func.func @transform_0(%arg0: i32) -> (i32, i32, i32) {
    %c0_i32 = arith.constant 0 : i32
    %c0_i32_0 = arith.constant 0 : i32
    %c0_i32_1 = arith.constant 0 : i32
    return %arg0, %c0_i32, %c0_i32_0 : i32, i32, i32
  }
  func.func @transform_1(%arg0: i32) -> (i32, i32, i32) {
    %c0_i32 = arith.constant 0 : i32
    %c0_i32_0 = arith.constant 0 : i32
    %c0_i32_1 = arith.constant 0 : i32
    return %arg0, %c0_i32, %c0_i32_0 : i32, i32, i32
  }
  func.func @transform_2(%arg0: i32) -> (i32, i32) {
    %c0_i32 = arith.constant 0 : i32
    %c0_i32_0 = arith.constant 0 : i32
    %c0_i32_1 = arith.constant 0 : i32
    return %c0_i32, %c0_i32_0 : i32, i32
  }
  func.func @transform_3(%arg0: i32) -> (i32, i32) {
    %c0_i32 = arith.constant 0 : i32
    %c0_i32_0 = arith.constant 0 : i32
    %c0_i32_1 = arith.constant 0 : i32
    return %c0_i32, %c0_i32_0 : i32, i32
  }
  func.func @transform_4(%arg0: i32) -> (i32, i32, i32) {
    %c0_i32 = arith.constant 0 : i32
    %c0_i32_0 = arith.constant 0 : i32
    %c0_i32_1 = arith.constant 0 : i32
    return %arg0, %c0_i32, %c0_i32_0 : i32, i32, i32
  }
}

</mosaic_0001>

<llo_original>
// kernel: attention_forward.1
$region0: #{attention_forward.1}
  #allocation0 [shape = 'u32[]', space=smem, size = 0x4, offset = 0x4, fixed_abs, tag = 'smem constant byte address 0x4 - core index']
  #allocation1 [shape = 'u32[72,128]{1,0:T(1,128)}', space=vmem, size = 0x9000, scoped, tag = 'internal scratch']
  %s0 = inlined_call_operand.vmem [shape: f32[2,8,32], index: 0, kind: input, shape index: {}]
  %s1 = inlined_call_operand.vmem [shape: f32[2,1,32], index: 1, kind: input, shape index: {}]
  %s2 = inlined_call_operand.vmem [shape: f32[32,32], index: 2, kind: input, shape index: {}]
  %s3 = inlined_call_operand.vmem [shape: f32[1,32], index: 3, kind: input, shape index: {}]
  %s4 = inlined_call_operand.hbm [shape: f32[2,1,32], index: 4, kind: output, shape index: {}]
  %s5 = sld [smem:[#allocation0]]
  $region26: #{attention_forward.1} parent=0
    _
  %s7 = ssub.s32 1, %s5
  %s8 = scalar_select 0, %s7, %s5
  $region1: #{attention_forward.1} parent=0
    #allocation2 [shape = 'u8[1024]{0}', space=vmem, size = 0x400, scoped, tag = 'output window, operand 0, single buffered']
    #allocation3 [shape = 's32[1]{0}', space=sflag, size = 0x4, scoped, tag = 'scoped memory for attention_forward.1']
    %9 = vsyncpa [#allocation3], 0
    // Predicated region
    $region2: #{attention_forward.1} parent=1 // pred_check
      _
    $region3: #{attention_forward.1} parent=1 // pred_check_branch
      %11 = sbr.rel (0) target = $region5
    $region4: #{attention_forward.1} parent=1 // pred_region
      _
    $region5: #{attention_forward.1} parent=1 // pred_fallthru
      _
    // Predicated region
    $region6: #{attention_forward.1} parent=1 // pred_check
      _
    $region7: #{attention_forward.1} parent=1 // pred_check_branch
      %13 = sbr.rel (0) target = $region9
    $region8: #{attention_forward.1} parent=1 // pred_region
      _
    $region9: #{attention_forward.1} parent=1 // pred_fallthru
      _
    // Predicated region
    $region10: #{attention_forward.1} parent=1 // pred_check
      _
    $region11: #{attention_forward.1} parent=1 // pred_check_branch
      %15 = sbr.rel (0) target = $region13
    $region12: #{attention_forward.1} parent=1 // pred_region
      _
    $region13: #{attention_forward.1} parent=1 // pred_fallthru
      _
    // Predicated region
    $region14: #{attention_forward.1} parent=1 // pred_check
      _
    $region15: #{attention_forward.1} parent=1 // pred_check_branch
      %17 = sbr.rel (0) target = $region17
    $region16: #{attention_forward.1} parent=1 // pred_region
      _
    $region17: #{attention_forward.1} parent=1 // pred_fallthru
      _
    %v18 = vld [vmem:[%s0] sm:$0xff]
    %v19 = vld [vmem:[%s0 + $0x8] sm:$0xff]
    %v20 = vld [vmem:[%s2] sm:$0xff]
    %v21 = vld [vmem:[%s2 + $0x8] sm:$0xff]
    %v22 = vld [vmem:[%s2 + $0x10] sm:$0xff]
    %v23 = vld [vmem:[%s2 + $0x18] sm:$0xff]
    %vm24 = vcmask 261120
    %v26 = vsel %vm24, %v18, 0
    %v29 = vsel %vm24, %v19, 0
    %31 = vmatpush.msra.mxu0 0.0
    %32 = vmatpush.msra.mxu0 0.0
    %33 = vmatpush.msra.mxu0 0.0
    %34 = vmatpush.msra.mxu0 0.0
    %35 = vmatpush.msra.mxu0 0.0
    %36 = vmatpush.msra.mxu0 0.0
    %37 = vmatpush.msra.mxu0 0.0
    %38 = vmatpush.msra.mxu0 0.0
    %39 = vmatpush.msra.mxu0 0.0
    %40 = vmatpush.msra.mxu0 0.0
    %41 = vmatpush.msra.mxu0 0.0
    %42 = vmatpush.msra.mxu0 0.0
    %43 = vmatpush.msra.mxu0 %v23
    %44 = vmatpush.msra.mxu0 %v22
    %45 = vmatpush.msra.mxu0 %v21
    %46 = vmatpush.msra.mxu0 %v20
    %47 = vmatmul.f32.gmra.mxu0 %v26
    %v48 = vpop.f32.mrf.mxu0
    %v49 = vadd.f32 0.0, %v48
    %50 = vmatmul.f32.gmra.mxu0 %v29
    %v51 = vpop.f32.mrf.mxu0
    %v52 = vadd.f32 0.0, %v51
    %53 = vdwg.mxu0
    %v54 = vld [vmem:[%s1] sm:$0x1]
    %v55 = vld [vmem:[%s1 + $0x1] sm:$0x1]
    %v58 = vperm.slane %v54, 0
    %v59 = vperm.slane %v55, 0
    %v62 = vadd.f32 %v49, %v58
    %v63 = vadd.f32 %v52, %v59
    %v64 = vtanh.pop %v62
    %v65 = vtanh.pop %v63
    %v66 = vld [vmem:[%s3] sm:$0x1]
    %v68 = vperm.slane %v66, 0
    %v70 = vmul.f32 %v64, %v68
    %v71 = vmul.f32 %v65, %v68
    %v72 = vsel %vm24, %v70, 0.0
    %73 = vadd.xlane.f32.xlu0 %v72
    %v74 = vpop.xlane.xlu0 %73
    %v75 = vsel %vm24, %v71, 0.0
    %76 = vadd.xlane.f32.xlu0 %v75
    %v77 = vpop.xlane.xlu0 %76
    %v80 = vlaneseq
    %v81 = vand.u32 %v80, 127
    %v82 = vperm.slane %v74, %v81
    %v83 = vperm.slane %v77, %v81
    %vm84 = vcmask 1041409
    %v85 = vsel %vm84, %v83, %v82
    %vm87 = vcmask 58368
    %v88 = vsel %vm87, %v85, -inf
    %89 = vmax.xlane.f32.xlu0 %v88
    %v90 = vpop.xlane.xlu0 %89
    %v92 = vperm.slane %v90, 0
    %v93 = vperm.slane %v90, 1
    %v96 = vsub.f32 %v74, %v92
    %v97 = vsub.f32 %v77, %v93
    %v98 = vmul.f32 %v96, 1.442695
    %v99 = vpow.pop %v98
    %v100 = vmul.f32 %v97, 1.442695
    %v101 = vpow.pop %v100
    %104 = vset.pattern.permute.xlu0 0
    %105 = vperm.xlu0 %104, %v99
    %v106 = vpop.permute.xlu0 %105
    %107 = vset.pattern.permute.xlu0 0
    %108 = vperm.xlu0 %107, %v101
    %v109 = vpop.permute.xlu0 %108
    %v110 = vperm.slane %v106, %v81
    %v111 = vperm.slane %v109, %v81
    %v112 = vsel %vm84, %v111, %v110
    %v114 = vsel %vm87, %v112, 0.0
    %115 = vadd.xlane.f32.xlu0 %v114
    %v116 = vpop.xlane.xlu0 %115
    %v117 = vrcp.pop %v116
    %v119 = vperm.slane %v117, 0
    %v120 = vperm.slane %v117, 1
    %v123 = vmul.f32 %v99, %v119
    %v124 = vmul.f32 %v101, %v120
    %126 = vset.pattern.permute.xlu0 0
    %127 = vperm.xlu0 %126, %v123
    %v128 = vpop.permute.xlu0 %127
    %131 = vset.pattern.permute.xlu0 0
    %132 = vperm.xlu0 %131, %v124
    %v133 = vpop.permute.xlu0 %132
    %v135 = vmul.f32 %v128, %v18
    %v136 = vmul.f32 %v133, %v19
    %v137 = vsel %vm24, %v135, 0.0
    %v138 = vrot.slane %v137, 4
    %v139 = vadd.f32 %v137, %v138
    %v140 = vrot.slane %v139, 2
    %v141 = vadd.f32 %v139, %v140
    %v142 = vrot.slane %v141, 1
    %v143 = vadd.f32 %v141, %v142
    %v144 = vsel %vm24, %v136, 0.0
    %v145 = vrot.slane %v144, 4
    %v146 = vadd.f32 %v144, %v145
    %v147 = vrot.slane %v146, 2
    %v148 = vadd.f32 %v146, %v147
    %v149 = vrot.slane %v148, 1
    %v150 = vadd.f32 %v148, %v149
    %vm151 = vcmask 253952
    %152 = vst.msk [vmem:[#allocation2] sm:$0x1] %vm151, %v143
    %153 = vst.msk [vmem:[#allocation2 + $0x1] sm:$0x1] %vm151, %v150
    // Predicated region
    $region18: #{attention_forward.1} parent=1 // pred_check
      _
    $region19: #{attention_forward.1} parent=1 // pred_check_branch
      %155 = sbr.rel (0) target = $region21
    $region20: #{attention_forward.1} parent=1 // pred_region
      %157 = vsyncadd [#allocation3], 0
      %s158 = sshll.u32 [#allocation2], 4
      %s159 = int_to_ptr.vmem [resolvable:$true] %s158
      %s160 = sshll.u32 %s4, 4
      %s161 = int_to_ptr.hbm [resolvable:$true] %s160
      %166 = dma.vmem_to_hbm [thread:$0]  %s159, 32, %s161, [#allocation3], 16, 16, 1
    $region21: #{attention_forward.1} parent=1 // pred_fallthru
      _
    // Predicated region
    $region22: #{attention_forward.1} parent=1 // pred_check
      _
    $region23: #{attention_forward.1} parent=1 // pred_check_branch
      %168 = sbr.rel (0) target = $region25
    $region24: #{attention_forward.1} parent=1 // pred_region
      %170 = dma.done [#allocation3], 32
    $region25: #{attention_forward.1} parent=1 // pred_fallthru
      _
    %171 = vsyncpa [#allocation3], 1

</llo_original>
